<compile_context>
chip_gen: v7x
topology: tpu7x:2x2x1
jax: 0.10.0
libtpu: 0.0.40
codegen_flags: <defaults>
</compile_context>

<pallas_src>
import functools

import jax
import jax.numpy as jnp
from jax import lax
from jax.experimental import pallas as pl
from jax.experimental.pallas import tpu as pltpu


def _fbeta_kernel(x_ref, t_ref, out_ref,
                  tp_acc, pred_acc, t_acc, bce_acc,
                  *, beta, n_rows, block_rows, needs_mask, inv_nc, inv_c):
    i = pl.program_id(0)

    @pl.when(i == 0)
    def _init():
        tp_acc[...] = jnp.zeros_like(tp_acc)
        pred_acc[...] = jnp.zeros_like(pred_acc)
        t_acc[...] = jnp.zeros_like(t_acc)
        bce_acc[...] = jnp.zeros_like(bce_acc)
        out_ref[0] = 0.0

    x = x_ref[...].astype(jnp.float32)          # (TN, C) logits tile
    t = t_ref[...].astype(jnp.float32)          # (TN, C) targets tile in {0,1}

    if needs_mask:
        # last tile extends past N: zero out the padded rows' contributions
        row = i * block_rows + lax.broadcasted_iota(jnp.int32, x.shape, 0)
        valid = row < n_rows
        x = jnp.where(valid, x, 0.0)
        t = jnp.where(valid, t, 0.0)

    # One transcendental per element, reused by both softplus and sigmoid.
    e = jnp.exp(-jnp.abs(x))                    # exp(-|x|) in (0, 1]
    softplus = jnp.log(1.0 + e)                 # log(1 + exp(-|x|))
    inv_1pe = pl.reciprocal(1.0 + e, approx=True)   # EUP vrcp, frees VALU
    p = jnp.where(x >= 0.0, inv_1pe, e * inv_1pe)   # sigmoid(x)

    # binary_cross_entropy_with_logits (numerically stable form), unreduced
    bce = jnp.maximum(x, 0.0) - x * t + softplus
    # predict = clamp(sigmoid*(1-t), min=0.01) + sigmoid*t
    predict = jnp.maximum(p * (1.0 - t), 0.01) + p * t

    if needs_mask:
        bce = jnp.where(valid, bce, 0.0)
        predict = jnp.where(valid, predict, 0.0)

    # per-class partial sums over this batch tile (sublane/XLU reductions)
    tp_acc[...] += jnp.sum(predict * t, axis=0, keepdims=True)
    pred_acc[...] += jnp.sum(predict, axis=0, keepdims=True)
    t_acc[...] += jnp.sum(t, axis=0, keepdims=True)
    bce_acc[...] += jnp.sum(bce, axis=0, keepdims=True)

    @pl.when(i == pl.num_programs(0) - 1)
    def _finalize():
        t_sum = t_acc[...]                                        # (1, C)
        # lack_cls = (target.sum(dim=0) == 0); lack_cls.any()
        lack_any = jnp.sum(jnp.where(t_sum == 0.0, 1.0, 0.0)) > 0.0
        bce_mean = jnp.sum(bce_acc[...]) * inv_nc                 # mean over N*C
        loss = jnp.where(lack_any, bce_mean, 0.0)

        tp = tp_acc[...]
        precision = tp / (pred_acc[...] + 1e-8)
        recall = tp / (t_sum + 1e-8)
        b2 = beta * beta
        f1 = (1.0 + b2) * (precision * recall / (b2 * precision + recall + 1e-8))
        f1_mean = jnp.sum(f1) * inv_c
        out_ref[0] = 1.0 - f1_mean + loss


def _vmem_capacity_bytes():
    try:
        return pltpu.get_tpu_info().vmem_capacity_bytes
    except Exception:  # interpret mode / non-TPU host
        return 64 * 1024 * 1024


def _default_block_rows(n, c, in_itemsize, vmem_cap):
    # Footprint model per tile row: 2 inputs x 2 pipeline buffers in native dtype
    # plus ~10 f32 temporaries live in the kernel body.  Budget is conservative
    # enough for v5e's 16 MiB default scoped VMEM and v7x's 64 MiB physical VMEM.
    budget = min(vmem_cap // 8, 8 * 1024 * 1024)
    per_row_bytes = c * (2 * 2 * in_itemsize + 10 * 4)
    tn = budget // max(per_row_bytes, 1)
    tn = max(32, (tn // 32) * 32)                 # sublane-friendly (f32/bf16/int8)
    tn = min(tn, max(32, pl.cdiv(n, 32) * 32))    # no bigger than the padded batch
    return tn


def fbeta_loss(logits, target, *, threshold=0.1, beta=2.0, reduction="mean",
               block_rows=None):
    # `threshold` is unused in the original forward pass; kept for signature parity.
    if logits.shape != target.shape:
        raise ValueError(
            f"Target size ({target.shape}) must be the same as input size ({logits.shape})"
        )
    if logits.ndim != 2:
        raise ValueError("expected (batch, num_classes) inputs")
    if reduction != "mean":
        # TODO(synk): reduction='none' branch of the PyTorch module (loss.mean(dim=0)
        # on a python int) is degenerate; only the default 'mean' path is implemented.
        raise NotImplementedError("only reduction='mean' is implemented")

    n, c = logits.shape
    in_itemsize = max(jnp.dtype(logits.dtype).itemsize, jnp.dtype(target.dtype).itemsize)
    vmem_cap = _vmem_capacity_bytes()
    tn = block_rows if block_rows is not None else _default_block_rows(
        n, c, in_itemsize, vmem_cap)
    grid = (pl.cdiv(n, tn),)
    needs_mask = (n % tn) != 0

    kernel = functools.partial(
        _fbeta_kernel,
        beta=float(beta), n_rows=n, block_rows=tn, needs_mask=needs_mask,
        inv_nc=1.0 / float(n * c), inv_c=1.0 / float(c))

    # TODO(synk): on v7x, additionally shard the class axis across the 2 TensorCores
    # (emit (1, C) partials + tiny JAX epilogue) for ~2x; single-axis reduction here.
    out = pl.pallas_call(
        kernel,
        out_shape=jax.ShapeDtypeStruct((1,), jnp.float32),
        grid=grid,
        in_specs=[
            pl.BlockSpec((tn, c), lambda i: (i, 0)),
            pl.BlockSpec((tn, c), lambda i: (i, 0)),
        ],
        out_specs=pl.BlockSpec(memory_space=pltpu.SMEM),
        scratch_shapes=[
            pltpu.VMEM((1, c), jnp.float32),   # tp accumulator
            pltpu.VMEM((1, c), jnp.float32),   # predict-sum accumulator
            pltpu.VMEM((1, c), jnp.float32),   # target-sum accumulator
            pltpu.VMEM((1, c), jnp.float32),   # per-class BCE partial sums
        ],
        compiler_params=pltpu.CompilerParams(
            dimension_semantics=("arbitrary",),
            vmem_limit_bytes=min(vmem_cap // 2, 32 * 1024 * 1024)),
    )(logits, target)    # inputs stay in native dtype (bf16 halves HBM traffic)
    return out[0]


def _fbeta_ref(logits, target, *, beta=2.0):
    # pure-JAX reference mirroring the PyTorch forward (reduction='mean')
    logits = logits.astype(jnp.float32)
    target = target.astype(jnp.float32)
    t_sum = target.sum(axis=0)
    lack_any = jnp.any(t_sum == 0.0)
    bce = jnp.maximum(logits, 0.0) - logits * target + jnp.log1p(jnp.exp(-jnp.abs(logits)))
    loss = jnp.where(lack_any, bce.mean(), 0.0)
    p = jax.nn.sigmoid(logits)
    predict = jnp.maximum(p * (1.0 - target), 0.01) + p * target
    tp = (predict * target).sum(axis=0)
    precision = tp / (predict.sum(axis=0) + 1e-8)
    recall = tp / (t_sum + 1e-8)
    b2 = beta * beta
    f1 = (1.0 + b2) * (precision * recall / (b2 * precision + recall + 1e-8))
    return 1.0 - f1.mean() + loss


if __name__ == "__main__":
    key = jax.random.PRNGKey(0)
    k1, k2 = jax.random.split(key)
    # batch deliberately NOT a multiple of the tile to exercise the masked last block
    N, C = 40, 128
    logits = jax.random.normal(k1, (N, C), dtype=jnp.float32).astype(jnp.bfloat16)
    target = (jax.random.uniform(k2, (N, C)) > 0.7).astype(jnp.bfloat16)

    out = fbeta_loss(logits, target, beta=2.0, block_rows=16)   # 3 grid steps
    out = jax.block_until_ready(out)

    ref = _fbeta_ref(logits, target, beta=2.0)
    # tolerance accounts for the approximate (EUP vrcp) reciprocal in the sigmoid
    assert jnp.allclose(out, ref, rtol=1e-2, atol=1e-2), (out, ref)
    print("KERNEL_OK")
</pallas_src>

<mosaic_0001>
module attributes {stable_mosaic.version = 11 : i64} {
  func.func @_fbeta_kernel(%arg0: i32, %arg1: memref<16x128xbf16, #tpu.memory_space<vmem>>, %arg2: memref<16x128xbf16, #tpu.memory_space<vmem>>, %arg3: memref<1xf32, #tpu.memory_space<smem>>, %arg4: memref<1x128xf32, #tpu.memory_space<vmem>>, %arg5: memref<1x128xf32, #tpu.memory_space<vmem>>, %arg6: memref<1x128xf32, #tpu.memory_space<vmem>>, %arg7: memref<1x128xf32, #tpu.memory_space<vmem>>) attributes {dimension_semantics = [#tpu.dimension_semantics<arbitrary>], iteration_bounds = array<i64: 3>, scalar_prefetch = 0 : i64, scratch_operands = 4 : i64, tpu.core_type = #tpu.core_type<tc>, window_params = [{transform_indices = @transform_0, window_bounds = array<i64: 16, 128>}, {transform_indices = @transform_1, window_bounds = array<i64: 16, 128>}, {transform_indices = @transform_2, window_bounds = array<i64: 1>}]} {
    %c0_i32 = arith.constant 0 : i32
    %0 = arith.cmpi eq, %arg0, %c0_i32 : i32
    %1 = arith.extui %0 : i1 to i32
    %c0_i32_0 = arith.constant 0 : i32
    %2 = arith.cmpi ne, %1, %c0_i32_0 : i32
    scf.if %2 {
      %cst_35 = arith.constant 0.000000e+00 : f32
      %71 = vector.broadcast %cst_35 : f32 to vector<1x128xf32>
      %c0_36 = arith.constant 0 : index
      %c0_37 = arith.constant 0 : index
      %72 = vector.load %arg4[%c0_36, %c0_37] : memref<1x128xf32, #tpu.memory_space<vmem>>, vector<1x128xf32>
      tpu.vector_store %arg4[%c0_36, %c0_37], %71 {strides = array<i32>} : memref<1x128xf32, #tpu.memory_space<vmem>>, vector<1x128xf32>,
      %cst_38 = arith.constant 0.000000e+00 : f32
      %73 = vector.broadcast %cst_38 : f32 to vector<1x128xf32>
      %c0_39 = arith.constant 0 : index
      %c0_40 = arith.constant 0 : index
      %74 = vector.load %arg5[%c0_39, %c0_40] : memref<1x128xf32, #tpu.memory_space<vmem>>, vector<1x128xf32>
      tpu.vector_store %arg5[%c0_39, %c0_40], %73 {strides = array<i32>} : memref<1x128xf32, #tpu.memory_space<vmem>>, vector<1x128xf32>,
      %cst_41 = arith.constant 0.000000e+00 : f32
      %75 = vector.broadcast %cst_41 : f32 to vector<1x128xf32>
      %c0_42 = arith.constant 0 : index
      %c0_43 = arith.constant 0 : index
      %76 = vector.load %arg6[%c0_42, %c0_43] : memref<1x128xf32, #tpu.memory_space<vmem>>, vector<1x128xf32>
      tpu.vector_store %arg6[%c0_42, %c0_43], %75 {strides = array<i32>} : memref<1x128xf32, #tpu.memory_space<vmem>>, vector<1x128xf32>,
      %cst_44 = arith.constant 0.000000e+00 : f32
      %77 = vector.broadcast %cst_44 : f32 to vector<1x128xf32>
      %c0_45 = arith.constant 0 : index
      %c0_46 = arith.constant 0 : index
      %78 = vector.load %arg7[%c0_45, %c0_46] : memref<1x128xf32, #tpu.memory_space<vmem>>, vector<1x128xf32>
      tpu.vector_store %arg7[%c0_45, %c0_46], %77 {strides = array<i32>} : memref<1x128xf32, #tpu.memory_space<vmem>>, vector<1x128xf32>,
      %cst_47 = arith.constant 0.000000e+00 : f32
      %c0_48 = arith.constant 0 : index
      %79 = memref.load %arg3[%c0_48] : memref<1xf32, #tpu.memory_space<smem>>
      memref.store %cst_47, %arg3[%c0_48] : memref<1xf32, #tpu.memory_space<smem>>
    } else {
    }
    %c0 = arith.constant 0 : index
    %c0_1 = arith.constant 0 : index
    %3 = vector.load %arg1[%c0, %c0_1] : memref<16x128xbf16, #tpu.memory_space<vmem>>, vector<16x128xbf16>
    %4 = arith.extf %3 : vector<16x128xbf16> to vector<16x128xf32>
    %c0_2 = arith.constant 0 : index
    %c0_3 = arith.constant 0 : index
    %5 = vector.load %arg2[%c0_2, %c0_3] : memref<16x128xbf16, #tpu.memory_space<vmem>>, vector<16x128xbf16>
    %6 = arith.extf %5 : vector<16x128xbf16> to vector<16x128xf32>
    %c16_i32 = arith.constant 16 : i32
    %7 = arith.muli %arg0, %c16_i32 : i32
    %8 = tpu.iota {dimensions = array<i32: 0>} : vector<16x128xi32>
    %9 = vector.broadcast %7 : i32 to vector<16x128xi32>
    %10 = arith.addi %9, %8 : vector<16x128xi32>
    %c40_i32 = arith.constant 40 : i32
    %11 = vector.broadcast %c40_i32 : i32 to vector<16x128xi32>
    %12 = arith.cmpi slt, %10, %11 : vector<16x128xi32>
    %cst = arith.constant 0.000000e+00 : f32
    %13 = vector.broadcast %cst : f32 to vector<16x128xf32>
    %14 = arith.select %12, %4, %13 : vector<16x128xi1>, vector<16x128xf32>
    %cst_4 = arith.constant 0.000000e+00 : f32
    %15 = vector.broadcast %cst_4 : f32 to vector<16x128xf32>
    %16 = arith.select %12, %6, %15 : vector<16x128xi1>, vector<16x128xf32>
    %17 = math.absf %14 : vector<16x128xf32>
    %cst_5 = arith.constant 0.000000e+00 : f32
    %18 = vector.broadcast %cst_5 : f32 to vector<16x128xf32>
    %19 = arith.subf %18, %17 : vector<16x128xf32>
    %20 = math.exp %19 : vector<16x128xf32>
    %cst_6 = arith.constant 1.000000e+00 : f32
    %21 = vector.broadcast %cst_6 : f32 to vector<16x128xf32>
    %22 = arith.addf %21, %20 : vector<16x128xf32>
    %23 = math.log %22 : vector<16x128xf32>
    %cst_7 = arith.constant 1.000000e+00 : f32
    %24 = vector.broadcast %cst_7 : f32 to vector<16x128xf32>
    %25 = arith.addf %24, %20 : vector<16x128xf32>
    %26 = tpu.reciprocal %25 {approx = true} : vector<16x128xf32> -> vector<16x128xf32>
    %cst_8 = arith.constant 0.000000e+00 : f32
    %27 = vector.broadcast %cst_8 : f32 to vector<16x128xf32>
    %28 = arith.cmpf oge, %14, %27 : vector<16x128xf32>
    %29 = arith.mulf %20, %26 : vector<16x128xf32>
    %30 = arith.select %28, %26, %29 : vector<16x128xi1>, vector<16x128xf32>
    %cst_9 = arith.constant 0.000000e+00 : f32
    %31 = vector.broadcast %cst_9 : f32 to vector<16x128xf32>
    %32 = arith.maximumf %14, %31 : vector<16x128xf32>
    %33 = arith.mulf %14, %16 : vector<16x128xf32>
    %34 = arith.subf %32, %33 : vector<16x128xf32>
    %35 = arith.addf %34, %23 : vector<16x128xf32>
    %cst_10 = arith.constant 1.000000e+00 : f32
    %36 = vector.broadcast %cst_10 : f32 to vector<16x128xf32>
    %37 = arith.subf %36, %16 : vector<16x128xf32>
    %38 = arith.mulf %30, %37 : vector<16x128xf32>
    %cst_11 = arith.constant 0.00999999977 : f32
    %39 = vector.broadcast %cst_11 : f32 to vector<16x128xf32>
    %40 = arith.maximumf %38, %39 : vector<16x128xf32>
    %41 = arith.mulf %30, %16 : vector<16x128xf32>
    %42 = arith.addf %40, %41 : vector<16x128xf32>
    %cst_12 = arith.constant 0.000000e+00 : f32
    %43 = vector.broadcast %cst_12 : f32 to vector<16x128xf32>
    %44 = arith.select %12, %35, %43 : vector<16x128xi1>, vector<16x128xf32>
    %cst_13 = arith.constant 0.000000e+00 : f32
    %45 = vector.broadcast %cst_13 : f32 to vector<16x128xf32>
    %46 = arith.select %12, %42, %45 : vector<16x128xi1>, vector<16x128xf32>
    %c0_14 = arith.constant 0 : index
    %c0_15 = arith.constant 0 : index
    %47 = vector.load %arg4[%c0_14, %c0_15] : memref<1x128xf32, #tpu.memory_space<vmem>>, vector<1x128xf32>
    %48 = arith.mulf %46, %16 : vector<16x128xf32>
    %cst_16 = arith.constant dense<0.000000e+00> : vector<128xf32>
    %49 = vector.multi_reduction <add>, %48, %cst_16 [0] : vector<16x128xf32> to vector<128xf32>
    %50 = vector.shape_cast %49 : vector<128xf32> to vector<1x128xf32>
    %51 = arith.addf %47, %50 : vector<1x128xf32>
    %c0_17 = arith.constant 0 : index
    %c0_18 = arith.constant 0 : index
    %52 = vector.load %arg4[%c0_17, %c0_18] : memref<1x128xf32, #tpu.memory_space<vmem>>, vector<1x128xf32>
    tpu.vector_store %arg4[%c0_17, %c0_18], %51 {strides = array<i32>} : memref<1x128xf32, #tpu.memory_space<vmem>>, vector<1x128xf32>,
    %c0_19 = arith.constant 0 : index
    %c0_20 = arith.constant 0 : index
    %53 = vector.load %arg5[%c0_19, %c0_20] : memref<1x128xf32, #tpu.memory_space<vmem>>, vector<1x128xf32>
    %cst_21 = arith.constant dense<0.000000e+00> : vector<128xf32>
    %54 = vector.multi_reduction <add>, %46, %cst_21 [0] : vector<16x128xf32> to vector<128xf32>
    %55 = vector.shape_cast %54 : vector<128xf32> to vector<1x128xf32>
    %56 = arith.addf %53, %55 : vector<1x128xf32>
    %c0_22 = arith.constant 0 : index
    %c0_23 = arith.constant 0 : index
    %57 = vector.load %arg5[%c0_22, %c0_23] : memref<1x128xf32, #tpu.memory_space<vmem>>, vector<1x128xf32>
    tpu.vector_store %arg5[%c0_22, %c0_23], %56 {strides = array<i32>} : memref<1x128xf32, #tpu.memory_space<vmem>>, vector<1x128xf32>,
    %c0_24 = arith.constant 0 : index
    %c0_25 = arith.constant 0 : index
    %58 = vector.load %arg6[%c0_24, %c0_25] : memref<1x128xf32, #tpu.memory_space<vmem>>, vector<1x128xf32>
    %cst_26 = arith.constant dense<0.000000e+00> : vector<128xf32>
    %59 = vector.multi_reduction <add>, %16, %cst_26 [0] : vector<16x128xf32> to vector<128xf32>
    %60 = vector.shape_cast %59 : vector<128xf32> to vector<1x128xf32>
    %61 = arith.addf %58, %60 : vector<1x128xf32>
    %c0_27 = arith.constant 0 : index
    %c0_28 = arith.constant 0 : index
    %62 = vector.load %arg6[%c0_27, %c0_28] : memref<1x128xf32, #tpu.memory_space<vmem>>, vector<1x128xf32>
    tpu.vector_store %arg6[%c0_27, %c0_28], %61 {strides = array<i32>} : memref<1x128xf32, #tpu.memory_space<vmem>>, vector<1x128xf32>,
    %c0_29 = arith.constant 0 : index
    %c0_30 = arith.constant 0 : index
    %63 = vector.load %arg7[%c0_29, %c0_30] : memref<1x128xf32, #tpu.memory_space<vmem>>, vector<1x128xf32>
    %cst_31 = arith.constant dense<0.000000e+00> : vector<128xf32>
    %64 = vector.multi_reduction <add>, %44, %cst_31 [0] : vector<16x128xf32> to vector<128xf32>
    %65 = vector.shape_cast %64 : vector<128xf32> to vector<1x128xf32>
    %66 = arith.addf %63, %65 : vector<1x128xf32>
    %c0_32 = arith.constant 0 : index
    %c0_33 = arith.constant 0 : index
    %67 = vector.load %arg7[%c0_32, %c0_33] : memref<1x128xf32, #tpu.memory_space<vmem>>, vector<1x128xf32>
    tpu.vector_store %arg7[%c0_32, %c0_33], %66 {strides = array<i32>} : memref<1x128xf32, #tpu.memory_space<vmem>>, vector<1x128xf32>,
    %c2_i32 = arith.constant 2 : i32
    %68 = arith.cmpi eq, %arg0, %c2_i32 : i32
    %69 = arith.extui %68 : i1 to i32
    %c0_i32_34 = arith.constant 0 : i32
    %70 = arith.cmpi ne, %69, %c0_i32_34 : i32
    scf.if %70 {
      %c0_35 = arith.constant 0 : index
      %c0_36 = arith.constant 0 : index
      %71 = vector.load %arg6[%c0_35, %c0_36] : memref<1x128xf32, #tpu.memory_space<vmem>>, vector<1x128xf32>
      %cst_37 = arith.constant 0.000000e+00 : f32
      %72 = vector.broadcast %cst_37 : f32 to vector<1x128xf32>
      %73 = arith.cmpf oeq, %71, %72 : vector<1x128xf32>
      %cst_38 = arith.constant 1.000000e+00 : f32
      %cst_39 = arith.constant 0.000000e+00 : f32
      %74 = vector.broadcast %cst_38 : f32 to vector<1x128xf32>
      %75 = vector.broadcast %cst_39 : f32 to vector<1x128xf32>
      %76 = arith.select %73, %74, %75 : vector<1x128xi1>, vector<1x128xf32>
      %77 = vector.shape_cast %76 : vector<1x128xf32> to vector<1x1x128xf32>
      %cst_40 = arith.constant dense<0.000000e+00> : vector<1xf32>
      %78 = vector.multi_reduction <add>, %77, %cst_40 [1, 2] : vector<1x1x128xf32> to vector<1xf32>
      %79 = vector.shape_cast %78 : vector<1xf32> to vector<1x1x1xf32>
      %80 = vector.extract %79[0, 0, 0] : f32 from vector<1x1x1xf32>
      %cst_41 = arith.constant 0.000000e+00 : f32
      %81 = arith.cmpf ogt, %80, %cst_41 : f32
      %c0_42 = arith.constant 0 : index
      %c0_43 = arith.constant 0 : index
      %82 = vector.load %arg7[%c0_42, %c0_43] : memref<1x128xf32, #tpu.memory_space<vmem>>, vector<1x128xf32>
      %83 = vector.shape_cast %82 : vector<1x128xf32> to vector<1x1x128xf32>
      %cst_44 = arith.constant dense<0.000000e+00> : vector<1xf32>
      %84 = vector.multi_reduction <add>, %83, %cst_44 [1, 2] : vector<1x1x128xf32> to vector<1xf32>
      %85 = vector.shape_cast %84 : vector<1xf32> to vector<1x1x1xf32>
      %86 = vector.extract %85[0, 0, 0] : f32 from vector<1x1x1xf32>
      %cst_45 = arith.constant 1.95312503E-4 : f32
      %87 = arith.mulf %86, %cst_45 : f32
      %cst_46 = arith.constant 0.000000e+00 : f32
      %88 = arith.select %81, %87, %cst_46 : f32
      %c0_47 = arith.constant 0 : index
      %c0_48 = arith.constant 0 : index
      %89 = vector.load %arg4[%c0_47, %c0_48] : memref<1x128xf32, #tpu.memory_space<vmem>>, vector<1x128xf32>
      %c0_49 = arith.constant 0 : index
      %c0_50 = arith.constant 0 : index
      %90 = vector.load %arg5[%c0_49, %c0_50] : memref<1x128xf32, #tpu.memory_space<vmem>>, vector<1x128xf32>
      %cst_51 = arith.constant 9.99999993E-9 : f32
      %91 = vector.broadcast %cst_51 : f32 to vector<1x128xf32>
      %92 = arith.addf %90, %91 : vector<1x128xf32>
      %93 = arith.divf %89, %92 : vector<1x128xf32>
      %cst_52 = arith.constant 9.99999993E-9 : f32
      %94 = vector.broadcast %cst_52 : f32 to vector<1x128xf32>
      %95 = arith.addf %71, %94 : vector<1x128xf32>
      %96 = arith.divf %89, %95 : vector<1x128xf32>
      %97 = arith.mulf %93, %96 : vector<1x128xf32>
      %cst_53 = arith.constant 4.000000e+00 : f32
      %98 = vector.broadcast %cst_53 : f32 to vector<1x128xf32>
      %99 = arith.mulf %98, %93 : vector<1x128xf32>
      %100 = arith.addf %99, %96 : vector<1x128xf32>
      %cst_54 = arith.constant 9.99999993E-9 : f32
      %101 = vector.broadcast %cst_54 : f32 to vector<1x128xf32>
      %102 = arith.addf %100, %101 : vector<1x128xf32>
      %103 = arith.divf %97, %102 : vector<1x128xf32>
      %cst_55 = arith.constant 5.000000e+00 : f32
      %104 = vector.broadcast %cst_55 : f32 to vector<1x128xf32>
      %105 = arith.mulf %104, %103 : vector<1x128xf32>
      %106 = vector.shape_cast %105 : vector<1x128xf32> to vector<1x1x128xf32>
      %cst_56 = arith.constant dense<0.000000e+00> : vector<1xf32>
      %107 = vector.multi_reduction <add>, %106, %cst_56 [1, 2] : vector<1x1x128xf32> to vector<1xf32>
      %108 = vector.shape_cast %107 : vector<1xf32> to vector<1x1x1xf32>
      %109 = vector.extract %108[0, 0, 0] : f32 from vector<1x1x1xf32>
      %cst_57 = arith.constant 7.812500e-03 : f32
      %110 = arith.mulf %109, %cst_57 : f32
      %cst_58 = arith.constant 1.000000e+00 : f32
      %111 = arith.subf %cst_58, %110 : f32
      %112 = arith.addf %111, %88 : f32
      %c0_59 = arith.constant 0 : index
      %113 = memref.load %arg3[%c0_59] : memref<1xf32, #tpu.memory_space<smem>>
      memref.store %112, %arg3[%c0_59] : memref<1xf32, #tpu.memory_space<smem>>
    } else {
    }
    return
  }
  func.func @transform_0(%arg0: i32) -> (i32, i32) {
    %c0_i32 = arith.constant 0 : i32
    %c0_i32_0 = arith.constant 0 : i32
    return %arg0, %c0_i32 : i32, i32
  }
  func.func @transform_1(%arg0: i32) -> (i32, i32) {
    %c0_i32 = arith.constant 0 : i32
    %c0_i32_0 = arith.constant 0 : i32
    return %arg0, %c0_i32 : i32, i32
  }
  func.func @transform_2(%arg0: i32) -> i32 {
    %c0_i32 = arith.constant 0 : i32
    %c0_i32_0 = arith.constant 0 : i32
    return %c0_i32 : i32
  }
}

</mosaic_0001>

<llo_original>
// kernel: tpu_custom_call.1
$region0: #{tpu_custom_call.1}
  #allocation0 [shape = 'u32[]', space=smem, size = 0x4, offset = 0x4, fixed_abs, tag = 'smem constant byte address 0x4 - core index']
  #allocation1 [shape = 'u32[144,128]{1,0:T(1,128)}', space=vmem, size = 0x12000, scoped, tag = 'internal scratch']
  #allocation2 [shape = 'f32[1,128]{1,0:T(1,128)}', space=vmem, size = 0x200, scoped, tag = 'scratch operand']
  #allocation3 [shape = 'f32[1,128]{1,0:T(1,128)}', space=vmem, size = 0x200, scoped, tag = 'scratch operand']
  #allocation4 [shape = 'f32[1,128]{1,0:T(1,128)}', space=vmem, size = 0x200, scoped, tag = 'scratch operand']
  #allocation5 [shape = 'f32[1,128]{1,0:T(1,128)}', space=vmem, size = 0x200, scoped, tag = 'scratch operand']
  %s0 = inlined_call_operand.hbm [shape: bf16[40,128], index: 0, kind: input, shape index: {}]
  %s1 = inlined_call_operand.hbm [shape: bf16[40,128], index: 1, kind: input, shape index: {}]
  %s2 = inlined_call_operand.hbm [shape: f32[1], index: 2, kind: output, shape index: {}]
  %s3 = sld [smem:[#allocation0]]
  $region57: #{tpu_custom_call.1} parent=0
    _
  %s5 = ssub.s32 1, %s3
  %s6 = scalar_select 0, %s5, %s3
  $region1: #{tpu_custom_call.1} parent=0
    #allocation6 [shape = 'u8[8192]{0}', space=vmem, size = 0x2000, scoped, tag = 'input window, operand 0']
    #allocation7 [shape = 's32[2]{0}', space=sflag, size = 0x8, scoped, tag = 'scoped memory for tpu_custom_call.1']
    #allocation8 [shape = 's32[2]{0}', space=sflag, size = 0x8, scoped, tag = 'scoped memory for tpu_custom_call.1']
    #allocation9 [shape = 'u8[8192]{0}', space=vmem, size = 0x2000, scoped, tag = 'input window, operand 1']
    #allocation10 [shape = 's32[2]{0}', space=sflag, size = 0x8, scoped, tag = 'scoped memory for tpu_custom_call.1']
    #allocation11 [shape = 'u8[512]{0}', space=smem, size = 0x200, scoped, tag = 'output window, operand 0, single buffered']
    %7 = vsyncpa [#allocation7], 0
    %s8 = scalar_lea.sflag [#allocation7], 1
    %9 = vsyncpa %s8, 0
    %10 = vsyncpa [#allocation10], 0
    %s11 = scalar_lea.sflag [#allocation10], 1
    %12 = vsyncpa %s11, 0
    %13 = vsyncpa [#allocation8], 0
    loop: start=0, step=1, limit=5
    $region2: #{tpu_custom_call.1} parent=1 // loop_pre_header
      _
    $region3: #{tpu_custom_call.1} parent=1 // loop_header
      %s15 = sphi 0, %s19
      %p16 = scmp.ge.s32.totalorder %s15, 5
      %s25 = sphi 0, %s27
      %s28 = sphi 0, %s25
      %s29 = sphi 0, %s28
      %s45 = sphi 0, %s29
      %s51 = sphi 0, %s53
      %s54 = sphi 0, %s51
      %s55 = sphi 0, %s54
      %s71 = sphi 0, %s55
      %s75 = sphi 0, %s75
      %s77 = sphi 0, %s75
      %s78 = sphi 0, %s77
      %s92 = sphi 0, %s78
    $region4: #{tpu_custom_call.1} parent=1 // loop_header_branch
      %18 = sbr.rel (%p16) target = $region8
    $region5: #{tpu_custom_call.1} parent=1 // loop_body
      %s20 = ssub.s32 %s15, 1
      %s21 = ssub.s32 %s15, 2
      %s22 = sadd.s32 %s15, 1
      %s23 = ssub.s32 %s15, %s22
      %p24 = scmp.eq.s32.totalorder %s23, 0
      %s26 = sadd.s32 %s25, 1
      %s27 = scalar_select %p24, %s25, %s26
      %p30 = pneg %p24
      %p31 = scmp.eq.s32.totalorder %s15, 2
      %p32 = por %p30, %p31
      %p33 = scmp.ne.s32.totalorder %s25, %s28
      %p34 = scmp.eq.s32.totalorder %s15, 0
      %p35 = por %p33, %p34
      %p36 = scmp.ne.s32.totalorder %s25, %s28
      %p37 = scmp.eq.s32.totalorder %s20, 2
      %p38 = por %p36, %p37
      %p39 = scmp.ne.s32.totalorder %s28, %s29
      %p40 = scmp.eq.s32.totalorder %s20, 0
      %p41 = por %p39, %p40
      %p42 = scmp.ne.s32.totalorder %s28, %s29
      %p43 = scmp.eq.s32.totalorder %s21, 2
      %p44 = por %p42, %p43
      %p46 = scmp.ne.s32.totalorder %s29, %s45
      %p47 = scmp.eq.s32.totalorder %s21, 0
      %p48 = por %p46, %p47
      %s49 = ssub.s32 %s15, %s22
      %p50 = scmp.eq.s32.totalorder %s49, 0
      %s52 = sadd.s32 %s51, 1
      %s53 = scalar_select %p50, %s51, %s52
      %p56 = pneg %p50
      %p57 = scmp.eq.s32.totalorder %s15, 2
      %p58 = por %p56, %p57
      %p59 = scmp.ne.s32.totalorder %s51, %s54
      %p60 = scmp.eq.s32.totalorder %s15, 0
      %p61 = por %p59, %p60
      %p62 = scmp.ne.s32.totalorder %s51, %s54
      %p63 = scmp.eq.s32.totalorder %s20, 2
      %p64 = por %p62, %p63
      %p65 = scmp.ne.s32.totalorder %s54, %s55
      %p66 = scmp.eq.s32.totalorder %s20, 0
      %p67 = por %p65, %p66
      %p68 = scmp.ne.s32.totalorder %s54, %s55
      %p69 = scmp.eq.s32.totalorder %s21, 2
      %p70 = por %p68, %p69
      %p72 = scmp.ne.s32.totalorder %s55, %s71
      %p73 = scmp.eq.s32.totalorder %s21, 0
      %p74 = por %p72, %p73
      %s76 = sadd.s32 %s75, 1
      %p79 = scmp.eq.s32.totalorder %s15, 2
      %p80 = scmp.ne.s32.totalorder %s75, %s77
      %p81 = scmp.eq.s32.totalorder %s15, 0
      %p82 = por %p80, %p81
      %p83 = scmp.ne.s32.totalorder %s75, %s77
      %p84 = scmp.eq.s32.totalorder %s20, 2
      %p85 = por %p83, %p84
      %p86 = scmp.ne.s32.totalorder %s77, %s78
      %p87 = scmp.eq.s32.totalorder %s20, 0
      %p88 = por %p86, %p87
      %p89 = scmp.ne.s32.totalorder %s77, %s78
      %p90 = scmp.eq.s32.totalorder %s21, 2
      %p91 = por %p89, %p90
      %p93 = scmp.ne.s32.totalorder %s78, %s92
      %p94 = scmp.eq.s32.totalorder %s21, 0
      %p95 = por %p93, %p94
      %p96 = scmp.le.s32.totalorder 1, %s15
      %p97 = scmp.lt.s32.totalorder %s15, 4
      %p98 = pnand %p96, %p97
      %p99 = pneg %p98
      // Predicated region
      $region9: #{tpu_custom_call.1} parent=5 // pred_check
        _
      $region10: #{tpu_custom_call.1} parent=5 // pred_check_branch
        %101 = sbr.rel (%p98) target = $region12
      $region11: #{tpu_custom_call.1} parent=5 // pred_region
        %s102 = ssub.s32 %s15, 1
      $region12: #{tpu_custom_call.1} parent=5 // pred_fallthru
        _
      %p103 = scmp.lt.s32.totalorder %s15, 3
      // Predicated region
      $region13: #{tpu_custom_call.1} parent=5 // pred_check
        %p104 = pneg %p103
      $region14: #{tpu_custom_call.1} parent=5 // pred_check_branch
        %106 = sbr.rel (%p104) target = $region16
      $region15: #{tpu_custom_call.1} parent=5 // pred_region
        // Predicated region
        $region17: #{tpu_custom_call.1} parent=15 // pred_check
          %p107 = pneg %p35
        $region18: #{tpu_custom_call.1} parent=15 // pred_check_branch
          %109 = sbr.rel (%p107) target = $region20
        $region19: #{tpu_custom_call.1} parent=15 // pred_region
          %s110 = sand.u32 %s25, 1
          %s111 = scalar_lea.sflag [#allocation7], %s110
          %s112 = sand.u32 %s25, 1
          %s113 = smul.addr %s112, 8
          %s114 = scalar_lea.vmem [#allocation6], %s113
          %s115 = smul.u32 2, %s15
          %s116 = ssub.s32 5, %s115
          %p117 = scmp.lt.s32.totalorder %s116, 2
          %s118 = scalar_select %p117, %s116, 2
          %s119 = smul.u32 64, %s118
          %s121 = ssub.s32 128, %s119
          %122 = vsyncadd %s111, %s121
          %p123 = scmp.ne.s32.totalorder 0, %s119
          %s124 = smul.addr %s115, 64
          %s125 = scalar_lea.hbm %s0, %s124
          %s126 = smul.u32 4, %s118
          %s127 = sshll.u32 %s114, 4
          %s128 = int_to_ptr.vmem [resolvable:$true] %s127
          %s129 = sshll.u32 %s126, 4
          %133 = dma.hbm_to_vmem [thread:$0]  (%p123), %s125, %s129, %s128, %s111, 64, 64, 4
        $region20: #{tpu_custom_call.1} parent=15 // pred_fallthru
          _
        // Predicated region
        $region21: #{tpu_custom_call.1} parent=15 // pred_check
          %p134 = pneg %p61
        $region22: #{tpu_custom_call.1} parent=15 // pred_check_branch
          %136 = sbr.rel (%p134) target = $region24
        $region23: #{tpu_custom_call.1} parent=15 // pred_region
          %s137 = sand.u32 %s51, 1
          %s138 = scalar_lea.sflag [#allocation10], %s137
          %s139 = sand.u32 %s51, 1
          %s140 = smul.addr %s139, 8
          %s141 = scalar_lea.vmem [#allocation9], %s140
          %s142 = smul.u32 2, %s15
          %s143 = ssub.s32 5, %s142
          %p144 = scmp.lt.s32.totalorder %s143, 2
          %s145 = scalar_select %p144, %s143, 2
          %s146 = smul.u32 64, %s145
          %s148 = ssub.s32 128, %s146
          %149 = vsyncadd %s138, %s148
          %p150 = scmp.ne.s32.totalorder 0, %s146
          %s151 = smul.addr %s142, 64
          %s152 = scalar_lea.hbm %s1, %s151
          %s153 = smul.u32 4, %s145
          %s154 = sshll.u32 %s141, 4
          %s155 = int_to_ptr.vmem [resolvable:$true] %s154
          %s156 = sshll.u32 %s153, 4
          %160 = dma.hbm_to_vmem [thread:$0]  (%p150), %s152, %s156, %s155, %s138, 64, 64, 4
        $region24: #{tpu_custom_call.1} parent=15 // pred_fallthru
          _
      $region16: #{tpu_custom_call.1} parent=5 // pred_fallthru
        _
      %p161 = scmp.le.s32.totalorder 1, %s15
      %p162 = scmp.lt.s32.totalorder %s15, 4
      %p163 = pnand %p161, %p162
      %p164 = pneg %p163
      // Predicated region
      $region25: #{tpu_custom_call.1} parent=5 // pred_check
        _
      $region26: #{tpu_custom_call.1} parent=5 // pred_check_branch
        %166 = sbr.rel (%p163) target = $region28
      $region27: #{tpu_custom_call.1} parent=5 // pred_region
        %s167 = ssub.s32 %s15, 1
        %s168 = sand.u32 %s28, 1
        %s169 = scalar_lea.sflag [#allocation7], %s168
        %s170 = sand.u32 %s28, 1
        %s171 = smul.addr %s170, 8
        %s172 = scalar_lea.vmem [#allocation6], %s171
        // Predicated region
        $region29: #{tpu_custom_call.1} parent=27 // pred_check
          %p173 = pneg %p41
        $region30: #{tpu_custom_call.1} parent=27 // pred_check_branch
          %175 = sbr.rel (%p173) target = $region32
        $region31: #{tpu_custom_call.1} parent=27 // pred_region
          %176 = dma.done %s169, 128
        $region32: #{tpu_custom_call.1} parent=27 // pred_fallthru
          _
        %s177 = sand.u32 %s54, 1
        %s178 = scalar_lea.sflag [#allocation10], %s177
        %s179 = sand.u32 %s54, 1
        %s180 = smul.addr %s179, 8
        %s181 = scalar_lea.vmem [#allocation9], %s180
        // Predicated region
        $region33: #{tpu_custom_call.1} parent=27 // pred_check
          %p182 = pneg %p67
        $region34: #{tpu_custom_call.1} parent=27 // pred_check_branch
          %184 = sbr.rel (%p182) target = $region36
        $region35: #{tpu_custom_call.1} parent=27 // pred_region
          %185 = dma.done %s178, 128
        $region36: #{tpu_custom_call.1} parent=27 // pred_fallthru
          _
        %s186 = sand.u32 %s28, 1
        %s187 = scalar_lea.sflag [#allocation7], %s186
        %s188 = sand.u32 %s28, 1
        %s189 = smul.addr %s188, 8
        %s190 = scalar_lea.vmem [#allocation6], %s189
        %p191 = pneg %p41
        %p192 = pneg %p38
        %s193 = sand.u32 %s54, 1
        %s194 = scalar_lea.sflag [#allocation10], %s193
        %s195 = sand.u32 %s54, 1
        %s196 = smul.addr %s195, 8
        %s197 = scalar_lea.vmem [#allocation9], %s196
        %p198 = pneg %p67
        %p199 = pneg %p64
        %p200 = pneg %p88
        %p201 = pneg %p85
        %s202 = smul.u32 2, %s20
        %s203 = ssub.s32 5, %s202
        %p204 = scmp.lt.s32.totalorder %s203, 2
        %s205 = scalar_select %p204, %s203, 2
        %s206 = smul.u32 64, %s205
        %s207 = smul.u32 2, %s20
        %s208 = ssub.s32 5, %s207
        %p209 = scmp.lt.s32.totalorder %s208, 2
        %s210 = scalar_select %p209, %s208, 2
        %s211 = smul.u32 64, %s210
        %p212 = scmp.eq.s32.totalorder %s20, 0
        // Predicated region
        $region37: #{tpu_custom_call.1} parent=27 // pred_check
          %p213 = pneg %p212
        $region38: #{tpu_custom_call.1} parent=27 // pred_check_branch
          %215 = sbr.rel (%p213) target = $region40
        $region39: #{tpu_custom_call.1} parent=27 // pred_region
          %216 = vst [vmem:[#allocation2] sm:$0x1] 0.0
          %217 = vst [vmem:[#allocation3] sm:$0x1] 0.0
          %218 = vst [vmem:[#allocation4] sm:$0x1] 0.0
          %219 = vst [vmem:[#allocation5] sm:$0x1] 0.0
          %s220 = scalar_lea.smem [#allocation11], 0
          %221 = sst [smem:[%s220]] 0.0
        $region40: #{tpu_custom_call.1} parent=27 // pred_fallthru
          _
        %v222 = vld [vmem:[%s172] sm:$0xf]
        %v223 = vld [vmem:[%s172 + $0x4] sm:$0xf]
        %v224 = vunpack.c.l.bf16 %v222
        %v225 = vunpack.c.l.bf16 %v223
        %v226 = vld [vmem:[%s181] sm:$0xf]
        %v227 = vld [vmem:[%s181 + $0x4] sm:$0xf]
        %v228 = vunpack.c.l.bf16 %v226
        %v229 = vunpack.c.l.bf16 %v227
        %s230 = smul.u32 %s20, 16
        %v231 = vlaneseq
        %v232 = vshrl.u32 %v231, 7
        %v233 = vadd.s32 %v232, 8
        %v234 = vstv %s230
        %v235 = vadd.s32 %v234, %v232
        %v236 = vadd.s32 %v234, %v233
        %vm237 = vcmp.lt.s32.totalorder %v235, 40
        %vm238 = vcmp.lt.s32.totalorder %v236, 40
        %v239 = vsel %vm237, %v224, 0.0
        %v240 = vsel %vm238, %v225, 0.0
        %v241 = vsel %vm237, %v228, 0.0
        %v242 = vsel %vm238, %v229, 0.0
        %v243 = vand.u32 2147483647, %v239
        %v244 = vand.u32 2147483647, %v240
        %v245 = vsub.f32 0.0, %v243
        %v246 = vsub.f32 0.0, %v244
        %v247 = vmul.f32 %v245, 1.442695
        %v248 = vpow.pop %v247
        %v249 = vmul.f32 %v246, 1.442695
        %v250 = vpow.pop %v249
        %v251 = vadd.f32 %v248, 1.0
        %v252 = vadd.f32 %v250, 1.0
        %v253 = vlog2.pop %v251
        %v254 = vmul.f32 %v253, 0.6931472
        %v255 = vlog2.pop %v252
        %v256 = vmul.f32 %v255, 0.6931472
        %v257 = vrcp.pop %v251
        %v258 = vrcp.pop %v252
        %vm259 = vcmp.ge.f32.partialorder %v239, 0.0
        %vm260 = vcmp.ge.f32.partialorder %v240, 0.0
        %v261 = vmul.f32 %v248, %v257
        %v262 = vmul.f32 %v250, %v258
        %v263 = vsel %vm259, %v257, %v261
        %v264 = vsel %vm260, %v258, %v262
        %v265 = vmax.f32 %v239, 0.0
        %v266 = vmax.f32 %v240, 0.0
        %v267 = vmul.f32 %v239, %v241
        %v268 = vmul.f32 %v240, %v242
        %v269 = vsub.f32 %v265, %v267
        %v270 = vsub.f32 %v266, %v268
        %v271 = vadd.f32 %v269, %v254
        %v272 = vadd.f32 %v270, %v256
        %v273 = vsub.f32 1.0, %v241
        %v274 = vsub.f32 1.0, %v242
        %v275 = vmul.f32 %v263, %v273
        %v276 = vmul.f32 %v264, %v274
        %v277 = vmax.f32 %v275, 0.01
        %v278 = vmax.f32 %v276, 0.01
        %v279 = vmul.f32 %v263, %v241
        %v280 = vmul.f32 %v264, %v242
        %v281 = vadd.f32 %v277, %v279
        %v282 = vadd.f32 %v278, %v280
        %v283 = vsel %vm237, %v271, 0.0
        %v284 = vsel %vm238, %v272, 0.0
        %v285 = vsel %vm237, %v281, 0.0
        %v286 = vsel %vm238, %v282, 0.0
        %v287 = vld [vmem:[#allocation2] sm:$0x1]
        %v288 = vmul.f32 %v285, %v241
        %v289 = vmul.f32 %v286, %v242
        %v290 = vadd.f32 %v288, %v289
        %v291 = vrot.slane %v290, 4
        %v292 = vadd.f32 %v290, %v291
        %v293 = vrot.slane %v292, 2
        %v294 = vadd.f32 %v292, %v293
        %v295 = vrot.slane %v294, 1
        %v296 = vadd.f32 %v294, %v295
        %v297 = vadd.f32 %v287, %v296
        %298 = vst [vmem:[#allocation2] sm:$0x1] %v297
        %v299 = vld [vmem:[#allocation3] sm:$0x1]
        %v300 = vadd.f32 %v285, %v286
        %v301 = vrot.slane %v300, 4
        %v302 = vadd.f32 %v300, %v301
        %v303 = vrot.slane %v302, 2
        %v304 = vadd.f32 %v302, %v303
        %v305 = vrot.slane %v304, 1
        %v306 = vadd.f32 %v304, %v305
        %v307 = vadd.f32 %v299, %v306
        %308 = vst [vmem:[#allocation3] sm:$0x1] %v307
        %v309 = vld [vmem:[#allocation4] sm:$0x1]
        %v310 = vadd.f32 %v241, %v242
        %v311 = vrot.slane %v310, 4
        %v312 = vadd.f32 %v310, %v311
        %v313 = vrot.slane %v312, 2
        %v314 = vadd.f32 %v312, %v313
        %v315 = vrot.slane %v314, 1
        %v316 = vadd.f32 %v314, %v315
        %v317 = vadd.f32 %v309, %v316
        %318 = vst [vmem:[#allocation4] sm:$0x1] %v317
        %v319 = vld [vmem:[#allocation5] sm:$0x1]
        %v320 = vadd.f32 %v283, %v284
        %v321 = vrot.slane %v320, 4
        %v322 = vadd.f32 %v320, %v321
        %v323 = vrot.slane %v322, 2
        %v324 = vadd.f32 %v322, %v323
        %v325 = vrot.slane %v324, 1
        %v326 = vadd.f32 %v324, %v325
        %v327 = vadd.f32 %v319, %v326
        %328 = vst [vmem:[#allocation5] sm:$0x1] %v327
        %p329 = scmp.eq.s32.totalorder %s20, 2
        // Predicated region
        $region41: #{tpu_custom_call.1} parent=27 // pred_check
          %p330 = pneg %p329
        $region42: #{tpu_custom_call.1} parent=27 // pred_check_branch
          %332 = sbr.rel (%p330) target = $region44
        $region43: #{tpu_custom_call.1} parent=27 // pred_region
          %v333 = vld [vmem:[#allocation4] sm:$0x1]
          %vm334 = vcmp.eq.f32.partialorder %v333, 0.0
          %v335 = vsel %vm334, 1.0, 0.0
          %vm336 = vcmask 1040384
          %v337 = vsel %vm336, %v335, 0.0
          %338 = vadd.xlane.f32.xlu0 %v337
          %v339 = vpop.xlane.xlu0 %338
          %v340 = vrot.slane %v339, 4
          %v341 = vadd.f32 %v339, %v340
          %v342 = vrot.slane %v341, 2
          %v343 = vadd.f32 %v341, %v342
          %v344 = vrot.slane %v343, 1
          %v345 = vadd.f32 %v343, %v344
          %s346 = vtos %v345
          %p347 = scmp.gt.f32.partialorder %s346, 0.0
          %v348 = vld [vmem:[#allocation5] sm:$0x1]
          %v349 = vsel %vm336, %v348, 0.0
          %350 = vadd.xlane.f32.xlu0 %v349
          %v351 = vpop.xlane.xlu0 %350
          %v352 = vrot.slane %v351, 4
          %v353 = vadd.f32 %v351, %v352
          %v354 = vrot.slane %v353, 2
          %v355 = vadd.f32 %v353, %v354
          %v356 = vrot.slane %v355, 1
          %v357 = vadd.f32 %v355, %v356
          %s358 = vtos %v357
          %s359 = smul.f32 %s358, 0.0001953125
          %s360 = scalar_select %p347, %s359, 0.0
          %v361 = vld [vmem:[#allocation2] sm:$0x1]
          %v362 = vld [vmem:[#allocation3] sm:$0x1]
          %v363 = vadd.f32 %v362, 1e-08
          %v364 = vrcp.pop %v363
          %v365 = vmul.f32 %v361, %v364
          %v366 = vadd.f32 %v333, 1e-08
          %v367 = vrcp.pop %v366
          %v368 = vmul.f32 %v361, %v367
          %v369 = vmul.f32 %v365, %v368
          %v370 = vmul.f32 %v365, 4.0
          %v371 = vadd.f32 %v370, %v368
          %v372 = vadd.f32 %v371, 1e-08
          %v373 = vrcp.pop %v372
          %v374 = vmul.f32 %v369, %v373
          %v375 = vmul.f32 %v374, 5.0
          %v376 = vsel %vm336, %v375, 0.0
          %377 = vadd.xlane.f32.xlu0 %v376
          %v378 = vpop.xlane.xlu0 %377
          %v379 = vrot.slane %v378, 4
          %v380 = vadd.f32 %v378, %v379
          %v381 = vrot.slane %v380, 2
          %v382 = vadd.f32 %v380, %v381
          %v383 = vrot.slane %v382, 1
          %v384 = vadd.f32 %v382, %v383
          %s385 = vtos %v384
          %s386 = smul.f32 %s385, 0.0078125
          %s387 = ssub.f32 1.0, %s386
          %s388 = sadd.f32 %s387, %s360
          %s389 = scalar_lea.smem [#allocation11], 0
          %390 = sst [smem:[%s389]] %s388
        $region44: #{tpu_custom_call.1} parent=27 // pred_fallthru
          _
        // Predicated region
        $region45: #{tpu_custom_call.1} parent=27 // pred_check
          %p391 = pneg %p85
        $region46: #{tpu_custom_call.1} parent=27 // pred_check_branch
          %393 = sbr.rel (%p391) target = $region48
        $region47: #{tpu_custom_call.1} parent=27 // pred_region
          %s395 = ssub.s32 16, 16
          %396 = vsyncadd [#allocation8], %s395
          %399 = dma.smem_to_hbm [#allocation11], 16, %s2, [#allocation8]
        $region48: #{tpu_custom_call.1} parent=27 // pred_fallthru
          _
        // Predicated region
        $region49: #{tpu_custom_call.1} parent=27 // pred_check
          %p400 = pneg %p85
        $region50: #{tpu_custom_call.1} parent=27 // pred_check_branch
          %402 = sbr.rel (%p400) target = $region52
        $region51: #{tpu_custom_call.1} parent=27 // pred_region
          %403 = dma.done [#allocation8], 16
        $region52: #{tpu_custom_call.1} parent=27 // pred_fallthru
          _
        %404 = sfence
      $region28: #{tpu_custom_call.1} parent=5 // pred_fallthru
        _
      %p405 = scmp.le.s32.totalorder 2, %s15
      // Predicated region
      $region53: #{tpu_custom_call.1} parent=5 // pred_check
        %p406 = pneg %p405
      $region54: #{tpu_custom_call.1} parent=5 // pred_check_branch
        %408 = sbr.rel (%p406) target = $region56
      $region55: #{tpu_custom_call.1} parent=5 // pred_region
        %s409 = ssub.s32 %s15, 2
      $region56: #{tpu_custom_call.1} parent=5 // pred_fallthru
        _
    $region6: #{tpu_custom_call.1} parent=1 // loop_footer
      %s19 = sadd.s32 1, %s15
    $region7: #{tpu_custom_call.1} parent=1 // loop_footer_branch
      %14 = sbr.rel target = $region3
    $region8: #{tpu_custom_call.1} parent=1 // loop_exit
      _
    %410 = vsyncpa [#allocation7], 1
    %s411 = scalar_lea.sflag [#allocation7], 1
    %412 = vsyncpa %s411, 1
    %413 = vsyncpa [#allocation10], 1
    %s414 = scalar_lea.sflag [#allocation10], 1
    %415 = vsyncpa %s414, 1
    %416 = vsyncpa [#allocation8], 1
    %s417 = scalar_lea.sflag [#allocation8], 1
    %418 = vsyncpa %s417, 1

</llo_original>
